<compile_context>
chip_gen: v6e
topology: v6e:2x2x1
jax: 0.10.0
libtpu: 0.0.40
codegen_flags: <defaults>
</compile_context>

<pallas_src>
import numpy as np

import jax
import jax.numpy as jnp
from jax.experimental import pallas as pl
from jax.experimental.pallas import tpu as pltpu


KERNEL_SIZE = 85
STRIDE = 32
C_OUT = 2
HIDDEN = 10
N_CLASSES = 2
BN_EPS = 1e-5


def _round_up(v, m):
    return (v + m - 1) // m * m


def _dims(in_channels, seq_length):
    l_out = (seq_length - KERNEL_SIZE) // STRIDE + 1
    conv_flat = C_OUT * l_out                          # PyTorch conv_output_size
    l_used = (l_out - 1) * STRIDE + KERNEL_SIZE        # last sample read + 1
    k_conv = in_channels * l_used                      # contraction length
    return l_out, conv_flat, l_used, k_conv


def _sp_layout(conv_flat):
    """Sublane-aligned row offsets inside the small packed-parameter slab."""
    r_bc = 0                                           # (1, conv_flat) conv+BN bias
    r_w1 = 8                                           # (conv_flat, HIDDEN) fc1^T
    r_b1 = _round_up(r_w1 + conv_flat, 8)              # (1, HIDDEN) fc1 bias
    r_w2 = _round_up(r_b1 + 1, 8)                      # (HIDDEN, N_CLASSES) fc2^T
    r_b2 = _round_up(r_w2 + HIDDEN, 8)                 # (1, N_CLASSES) fc2 bias
    rows = _round_up(r_b2 + 1, 8)
    lanes = max(128, _round_up(conv_flat, 128))
    return r_bc, r_w1, r_b1, r_w2, r_b2, rows, lanes


# ------------------------- one-time parameter prep ------------------------- #

def prepare_params(params, in_channels=2, seq_length=1002):
    """Host-side, one-time preprocessing.  Reuse the result for every call.

    Folds eval-mode BatchNorm into the conv, builds the banded conv-weight
    matrix (so conv+flatten is a single matmul in PyTorch flatten order), and
    packs the remaining tiny parameters into one lane-dense slab.
    """
    l_out, conv_flat, l_used, k_conv = _dims(in_channels, seq_length)

    conv_w = np.asarray(params["conv_w"], np.float32)          # (C_OUT, C_in, K)
    conv_b = np.asarray(params["conv_b"], np.float32)
    gamma = np.asarray(params["bn_gamma"], np.float32)
    beta = np.asarray(params["bn_beta"], np.float32)
    mean = np.asarray(params["bn_mean"], np.float32)
    var = np.asarray(params["bn_var"], np.float32)

    scale = gamma / np.sqrt(var + BN_EPS)
    w_fold = conv_w * scale[:, None, None]                      # BN folded weight
    b_fold = (conv_b - mean) * scale + beta                     # BN folded bias

    # Banded matrix: column (o*l_out + l) holds the folded kernel of output
    # channel o placed at input offset l*STRIDE for every input channel, so
    #   flat_act[b, o*l_out + l] = x_flat[b, :] @ w_band[:, o*l_out + l]
    # reproduces Conv1d(stride=32)+BN and PyTorch's channel-major x.view(B,-1).
    w_band = np.zeros((k_conv, conv_flat), np.float32)
    for o in range(C_OUT):
        for c in range(in_channels):
            for l in range(l_out):
                r0 = c * l_used + l * STRIDE
                w_band[r0:r0 + KERNEL_SIZE, o * l_out + l] = w_fold[o, c]

    r_bc, r_w1, r_b1, r_w2, r_b2, rows, lanes = _sp_layout(conv_flat)
    sp = np.zeros((rows, lanes), np.float32)
    sp[r_bc, :conv_flat] = np.repeat(b_fold, l_out)              # channel-major
    sp[r_w1:r_w1 + conv_flat, :HIDDEN] = np.asarray(params["fc1_w"], np.float32).T
    sp[r_b1, :HIDDEN] = np.asarray(params["fc1_b"], np.float32)
    sp[r_w2:r_w2 + HIDDEN, :N_CLASSES] = np.asarray(params["fc2_w"], np.float32).T
    sp[r_b2, :N_CLASSES] = np.asarray(params["fc2_b"], np.float32)

    return jnp.asarray(w_band), jnp.asarray(sp)


# ------------------------------ fused kernel ------------------------------- #

def _make_fused_kernel(conv_flat):
    r_bc, r_w1, r_b1, r_w2, r_b2, _, _ = _sp_layout(conv_flat)

    def fused_kernel(x_ref, wband_ref, sp_ref, o_ref):
        # x_ref:     (B, C_in*l_used)          flattened input samples
        # wband_ref: (C_in*l_used, conv_flat)  BN-folded banded conv weight
        # sp_ref:    (rows, 128)               packed small parameters
        # o_ref:     (B, N_CLASSES)
        # conv1 + BN + flatten: one MXU contraction; result is already in
        # PyTorch's channel-major flatten order.
        conv = jnp.dot(x_ref[...], wband_ref[...],
                       preferred_element_type=jnp.float32)       # (B, conv_flat)
        flat = jnp.maximum(conv + sp_ref[r_bc:r_bc + 1, :conv_flat], 0.0)

        h = jnp.dot(flat, sp_ref[r_w1:r_w1 + conv_flat, :HIDDEN],
                    preferred_element_type=jnp.float32)           # (B, HIDDEN)
        h = jnp.maximum(h + sp_ref[r_b1:r_b1 + 1, :HIDDEN], 0.0)
        # dropout1: identity in eval mode.

        out = jnp.dot(h, sp_ref[r_w2:r_w2 + HIDDEN, :N_CLASSES],
                      preferred_element_type=jnp.float32)         # (B, N_CLASSES)
        o_ref[...] = (out + sp_ref[r_b2:r_b2 + 1, :N_CLASSES]).astype(o_ref.dtype)

    return fused_kernel


# ------------------------------ JAX wrapper -------------------------------- #

@jax.jit
def small_conv1d_mlp_forward(x, w_band, sp):
    B, c_in, seq = x.shape
    l_out, conv_flat, l_used, k_conv = _dims(c_in, seq)
    assert w_band.shape == (k_conv, conv_flat)

    # Only per-call input prep: slice to the samples the conv actually reads
    # and flatten (channel, position) into one contraction axis (~16 KB copy).
    x_flat = x.astype(jnp.float32)[:, :, :l_used].reshape(B, k_conv)

    flops = 2 * B * (k_conv * conv_flat + conv_flat * HIDDEN + HIDDEN * N_CLASSES)
    bytes_accessed = 4 * (x_flat.size + w_band.size + sp.size + B * N_CLASSES)

    return pl.pallas_call(
        _make_fused_kernel(conv_flat),
        out_shape=jax.ShapeDtypeStruct((B, N_CLASSES), jnp.float32),
        # No grid: single invocation with whole operands resident in VMEM
        # (total ~1 MB), so no double-buffered pipeline machinery is built.
        in_specs=[pl.BlockSpec(memory_space=pltpu.MemorySpace.VMEM)] * 3,
        out_specs=pl.BlockSpec(memory_space=pltpu.MemorySpace.VMEM),
        cost_estimate=pl.CostEstimate(flops=flops, transcendentals=0,
                                      bytes_accessed=bytes_accessed),
    )(x_flat, w_band, sp)


# ----------------------------- reference & init ---------------------------- #

def reference_forward(x, params):
    """Pure-JAX eval-mode reference mirroring the PyTorch module."""
    hi = jax.lax.Precision.HIGHEST
    B, c_in, seq = x.shape
    l_out = (seq - KERNEL_SIZE) // STRIDE + 1
    idx = jnp.arange(l_out)[:, None] * STRIDE + jnp.arange(KERNEL_SIZE)[None, :]
    patches = x[:, :, idx]                                       # (B, C_in, l_out, K)
    conv = (jnp.einsum("bclk,ock->bol", patches, params["conv_w"], precision=hi)
            + params["conv_b"][None, :, None])
    scale = params["bn_gamma"] / jnp.sqrt(params["bn_var"] + BN_EPS)
    shift = params["bn_beta"] - params["bn_mean"] * scale
    y = jnp.maximum(conv * scale[None, :, None] + shift[None, :, None], 0.0)
    flat = y.reshape(B, -1)
    h = jnp.maximum(jnp.dot(flat, params["fc1_w"].T, precision=hi)
                    + params["fc1_b"], 0.0)
    return jnp.dot(h, params["fc2_w"].T, precision=hi) + params["fc2_b"]


def init_params(key, in_channels, seq_length):
    conv_output_size = ((seq_length - KERNEL_SIZE) // STRIDE + 1) * C_OUT
    ks = jax.random.split(key, 8)
    return {
        "conv_w": 0.1 * jax.random.normal(ks[0], (C_OUT, in_channels, KERNEL_SIZE), jnp.float32),
        "conv_b": 0.1 * jax.random.normal(ks[1], (C_OUT,), jnp.float32),
        "bn_gamma": 1.0 + 0.1 * jax.random.normal(ks[2], (C_OUT,), jnp.float32),
        "bn_beta": 0.1 * jax.random.normal(ks[3], (C_OUT,), jnp.float32),
        "bn_mean": 0.05 * jax.random.normal(ks[4], (C_OUT,), jnp.float32),
        "bn_var": jnp.abs(1.0 + 0.1 * jax.random.normal(ks[5], (C_OUT,), jnp.float32)),
        "fc1_w": 0.1 * jax.random.normal(ks[6], (HIDDEN, conv_output_size), jnp.float32),
        "fc1_b": jnp.zeros((HIDDEN,), jnp.float32),
        "fc2_w": 0.1 * jax.random.normal(ks[7], (N_CLASSES, HIDDEN), jnp.float32),
        "fc2_b": jnp.zeros((N_CLASSES,), jnp.float32),
    }


if __name__ == "__main__":
    # Module defaults: in_channels=2, seq_length=1002 -> L_out=29, conv_output_size=58.
    batch, in_channels, seq_length = 2, 2, 1002

    key = jax.random.PRNGKey(0)
    k_x, k_p = jax.random.split(key)
    x = jax.random.normal(k_x, (batch, in_channels, seq_length), jnp.float32)
    params = init_params(k_p, in_channels, seq_length)

    # One-time parameter preprocessing (outside the per-call path).
    w_band, sp = prepare_params(params, in_channels, seq_length)

    out = small_conv1d_mlp_forward(x, w_band, sp)
    out = jax.block_until_ready(out)
    assert out.shape == (batch, N_CLASSES) and out.dtype == jnp.float32

    ref = reference_forward(x, params)
    assert jnp.allclose(out, ref, atol=1e-3, rtol=1e-3), (out, ref)
    print("KERNEL_OK")
</pallas_src>

<mosaic_0001>
module attributes {stable_mosaic.version = 11 : i64} {
  func.func @fused_kernel(%arg0: memref<2x1962xf32, #tpu.memory_space<vmem>>, %arg1: memref<1962x58xf32, #tpu.memory_space<vmem>>, %arg2: memref<104x128xf32, #tpu.memory_space<vmem>>, %arg3: memref<2x2xf32, #tpu.memory_space<vmem>>) attributes {dimension_semantics = [], scalar_prefetch = 0 : i64, scratch_operands = 0 : i64, tpu.core_type = #tpu.core_type<tc>} {
    %c0 = arith.constant 0 : index
    %c0_0 = arith.constant 0 : index
    %0 = vector.load %arg0[%c0, %c0_0] : memref<2x1962xf32, #tpu.memory_space<vmem>>, vector<2x1962xf32>
    %c0_1 = arith.constant 0 : index
    %c0_2 = arith.constant 0 : index
    %1 = vector.load %arg1[%c0_1, %c0_2] : memref<1962x58xf32, #tpu.memory_space<vmem>>, vector<1962x58xf32>
    %cst = arith.constant dense<0.000000e+00> : vector<2x58xf32>
    %2 = tpu.matmul %0, %1, %cst {dimension_numbers = #tpu.dot_dimension_numbers<[1], [0], [0], [1], [0, 0, 1, 1], [], []>} : vector<2x1962xf32>, vector<1962x58xf32>, vector<2x58xf32> -> vector<2x58xf32>
    %c0_3 = arith.constant 0 : index
    %c0_4 = arith.constant 0 : index
    %3 = vector.load %arg2[%c0_3, %c0_4] : memref<104x128xf32, #tpu.memory_space<vmem>>, vector<1x58xf32>
    %4 = vector.broadcast %3 : vector<1x58xf32> to vector<2x58xf32>
    %5 = arith.addf %2, %4 : vector<2x58xf32>
    %cst_5 = arith.constant 0.000000e+00 : f32
    %6 = vector.broadcast %cst_5 : f32 to vector<2x58xf32>
    %7 = arith.maximumf %5, %6 : vector<2x58xf32>
    %c8 = arith.constant 8 : index
    %c0_6 = arith.constant 0 : index
    %8 = vector.load %arg2[%c8, %c0_6] : memref<104x128xf32, #tpu.memory_space<vmem>>, vector<58x10xf32>
    %cst_7 = arith.constant dense<0.000000e+00> : vector<2x10xf32>
    %9 = tpu.matmul %7, %8, %cst_7 {dimension_numbers = #tpu.dot_dimension_numbers<[1], [0], [0], [1], [0, 0, 1, 1], [], []>} : vector<2x58xf32>, vector<58x10xf32>, vector<2x10xf32> -> vector<2x10xf32>
    %c72 = arith.constant 72 : index
    %c0_8 = arith.constant 0 : index
    %10 = vector.load %arg2[%c72, %c0_8] : memref<104x128xf32, #tpu.memory_space<vmem>>, vector<1x10xf32>
    %11 = vector.broadcast %10 : vector<1x10xf32> to vector<2x10xf32>
    %12 = arith.addf %9, %11 : vector<2x10xf32>
    %cst_9 = arith.constant 0.000000e+00 : f32
    %13 = vector.broadcast %cst_9 : f32 to vector<2x10xf32>
    %14 = arith.maximumf %12, %13 : vector<2x10xf32>
    %c80 = arith.constant 80 : index
    %c0_10 = arith.constant 0 : index
    %15 = vector.load %arg2[%c80, %c0_10] : memref<104x128xf32, #tpu.memory_space<vmem>>, vector<10x2xf32>
    %cst_11 = arith.constant dense<0.000000e+00> : vector<2x2xf32>
    %16 = tpu.matmul %14, %15, %cst_11 {dimension_numbers = #tpu.dot_dimension_numbers<[1], [0], [0], [1], [0, 0, 1, 1], [], []>} : vector<2x10xf32>, vector<10x2xf32>, vector<2x2xf32> -> vector<2x2xf32>
    %c96 = arith.constant 96 : index
    %c0_12 = arith.constant 0 : index
    %17 = vector.load %arg2[%c96, %c0_12] : memref<104x128xf32, #tpu.memory_space<vmem>>, vector<1x2xf32>
    %18 = vector.broadcast %17 : vector<1x2xf32> to vector<2x2xf32>
    %19 = arith.addf %16, %18 : vector<2x2xf32>
    %c0_13 = arith.constant 0 : index
    %c0_14 = arith.constant 0 : index
    %20 = vector.load %arg3[%c0_13, %c0_14] : memref<2x2xf32, #tpu.memory_space<vmem>>, vector<2x2xf32>
    tpu.vector_store %arg3[%c0_13, %c0_14], %19 {strides = array<i32>} : memref<2x2xf32, #tpu.memory_space<vmem>>, vector<2x2xf32>,
    return
  }
}

</mosaic_0001>

<llo_original>
// kernel: small_conv1d_mlp_forward.1
$region0: #{small_conv1d_mlp_forward.1}
  #allocation0 [shape = 'u32[]', space=smem, size = 0x4, offset = 0x4, fixed_abs, tag = 'smem constant byte address 0x4 - core index']
  #allocation1 [shape = 'u32[144,128]{1,0:T(1,128)}', space=vmem, size = 0x12000, scoped, tag = 'internal scratch']
  %s0 = inlined_call_operand.vmem [shape: f32[2,1962], index: 0, kind: input, shape index: {}]
  %s1 = inlined_call_operand.vmem [shape: f32[1962,58], index: 1, kind: input, shape index: {}]
  %s2 = inlined_call_operand.vmem [shape: f32[104,128], index: 2, kind: input, shape index: {}]
  %s3 = inlined_call_operand.hbm [shape: f32[2,2], index: 3, kind: output, shape index: {}]
  %s4 = sld [smem:[#allocation0]]
  $region22: #{small_conv1d_mlp_forward.1} parent=0
    _
  %s6 = ssub.s32 1, %s4
  %s7 = scalar_select 0, %s6, %s4
  $region1: #{small_conv1d_mlp_forward.1} parent=0
    #allocation2 [shape = 'u8[1024]{0}', space=vmem, size = 0x400, scoped, tag = 'output window, operand 0, single buffered']
    #allocation3 [shape = 's32[1]{0}', space=sflag, size = 0x4, scoped, tag = 'scoped memory for small_conv1d_mlp_forward.1']
    %8 = vsyncpa [#allocation3], 0
    // Predicated region
    $region2: #{small_conv1d_mlp_forward.1} parent=1 // pred_check
      _
    $region3: #{small_conv1d_mlp_forward.1} parent=1 // pred_check_branch
      %10 = sbr.rel (0) target = $region5
    $region4: #{small_conv1d_mlp_forward.1} parent=1 // pred_region
      _
    $region5: #{small_conv1d_mlp_forward.1} parent=1 // pred_fallthru
      _
    // Predicated region
    $region6: #{small_conv1d_mlp_forward.1} parent=1 // pred_check
      _
    $region7: #{small_conv1d_mlp_forward.1} parent=1 // pred_check_branch
      %12 = sbr.rel (0) target = $region9
    $region8: #{small_conv1d_mlp_forward.1} parent=1 // pred_region
      _
    $region9: #{small_conv1d_mlp_forward.1} parent=1 // pred_fallthru
      _
    // Predicated region
    $region10: #{small_conv1d_mlp_forward.1} parent=1 // pred_check
      _
    $region11: #{small_conv1d_mlp_forward.1} parent=1 // pred_check_branch
      %14 = sbr.rel (0) target = $region13
    $region12: #{small_conv1d_mlp_forward.1} parent=1 // pred_region
      _
    $region13: #{small_conv1d_mlp_forward.1} parent=1 // pred_fallthru
      _
    %v15 = vld [vmem:[%s0] sm:$0xff]
    %v16 = vld [vmem:[%s0 + $0x8] sm:$0xff]
    %v17 = vld [vmem:[%s0 + $0x10] sm:$0xff]
    %v18 = vld [vmem:[%s0 + $0x18] sm:$0xff]
    %v19 = vld [vmem:[%s1] sm:$0xff]
    %v20 = vld [vmem:[%s1 + $0x8] sm:$0xff]
    %v21 = vld [vmem:[%s1 + $0x10] sm:$0xff]
    %v22 = vld [vmem:[%s1 + $0x18] sm:$0xff]
    %v23 = vld [vmem:[%s1 + $0x20] sm:$0xff]
    %v24 = vld [vmem:[%s1 + $0x28] sm:$0xff]
    %v25 = vld [vmem:[%s1 + $0x30] sm:$0xff]
    %v26 = vld [vmem:[%s1 + $0x38] sm:$0xff]
    %v27 = vld [vmem:[%s1 + $0x40] sm:$0xff]
    %v28 = vld [vmem:[%s1 + $0x48] sm:$0xff]
    %v29 = vld [vmem:[%s1 + $0x50] sm:$0xff]
    %v30 = vld [vmem:[%s1 + $0x58] sm:$0xff]
    %v31 = vld [vmem:[%s1 + $0x60] sm:$0xff]
    %v32 = vld [vmem:[%s1 + $0x68] sm:$0xff]
    %v33 = vld [vmem:[%s1 + $0x70] sm:$0xff]
    %v34 = vld [vmem:[%s1 + $0x78] sm:$0xff]
    %v35 = vld [vmem:[%s1 + $0x80] sm:$0xff]
    %v36 = vld [vmem:[%s1 + $0x88] sm:$0xff]
    %v37 = vld [vmem:[%s1 + $0x90] sm:$0xff]
    %v38 = vld [vmem:[%s1 + $0x98] sm:$0xff]
    %v39 = vld [vmem:[%s1 + $0xa0] sm:$0xff]
    %v40 = vld [vmem:[%s1 + $0xa8] sm:$0xff]
    %v41 = vld [vmem:[%s1 + $0xb0] sm:$0xff]
    %v42 = vld [vmem:[%s1 + $0xb8] sm:$0xff]
    %v43 = vld [vmem:[%s1 + $0xc0] sm:$0xff]
    %v44 = vld [vmem:[%s1 + $0xc8] sm:$0xff]
    %v45 = vld [vmem:[%s1 + $0xd0] sm:$0xff]
    %v46 = vld [vmem:[%s1 + $0xd8] sm:$0xff]
    %v47 = vld [vmem:[%s1 + $0xe0] sm:$0xff]
    %v48 = vld [vmem:[%s1 + $0xe8] sm:$0xff]
    %v49 = vld [vmem:[%s1 + $0xf0] sm:$0xff]
    %v50 = vld [vmem:[%s1 + $0xf8] sm:$0xff]
    %v51 = vld [vmem:[%s1 + $0x100] sm:$0xff]
    %v52 = vld [vmem:[%s1 + $0x108] sm:$0xff]
    %v53 = vld [vmem:[%s1 + $0x110] sm:$0xff]
    %v54 = vld [vmem:[%s1 + $0x118] sm:$0xff]
    %v55 = vld [vmem:[%s1 + $0x120] sm:$0xff]
    %v56 = vld [vmem:[%s1 + $0x128] sm:$0xff]
    %v57 = vld [vmem:[%s1 + $0x130] sm:$0xff]
    %v58 = vld [vmem:[%s1 + $0x138] sm:$0xff]
    %v59 = vld [vmem:[%s1 + $0x140] sm:$0xff]
    %v60 = vld [vmem:[%s1 + $0x148] sm:$0xff]
    %v61 = vld [vmem:[%s1 + $0x150] sm:$0xff]
    %v62 = vld [vmem:[%s1 + $0x158] sm:$0xff]
    %v63 = vld [vmem:[%s1 + $0x160] sm:$0xff]
    %v64 = vld [vmem:[%s1 + $0x168] sm:$0xff]
    %v65 = vld [vmem:[%s1 + $0x170] sm:$0xff]
    %v66 = vld [vmem:[%s1 + $0x178] sm:$0xff]
    %v67 = vld [vmem:[%s1 + $0x180] sm:$0xff]
    %v68 = vld [vmem:[%s1 + $0x188] sm:$0xff]
    %v69 = vld [vmem:[%s1 + $0x190] sm:$0xff]
    %v70 = vld [vmem:[%s1 + $0x198] sm:$0xff]
    %v71 = vld [vmem:[%s1 + $0x1a0] sm:$0xff]
    %v72 = vld [vmem:[%s1 + $0x1a8] sm:$0xff]
    %v73 = vld [vmem:[%s1 + $0x1b0] sm:$0xff]
    %v74 = vld [vmem:[%s1 + $0x1b8] sm:$0xff]
    %v75 = vld [vmem:[%s1 + $0x1c0] sm:$0xff]
    %v76 = vld [vmem:[%s1 + $0x1c8] sm:$0xff]
    %v77 = vld [vmem:[%s1 + $0x1d0] sm:$0xff]
    %v78 = vld [vmem:[%s1 + $0x1d8] sm:$0xff]
    %v79 = vld [vmem:[%s1 + $0x1e0] sm:$0xff]
    %v80 = vld [vmem:[%s1 + $0x1e8] sm:$0xff]
    %v81 = vld [vmem:[%s1 + $0x1f0] sm:$0xff]
    %v82 = vld [vmem:[%s1 + $0x1f8] sm:$0xff]
    %v83 = vld [vmem:[%s1 + $0x200] sm:$0xff]
    %v84 = vld [vmem:[%s1 + $0x208] sm:$0xff]
    %v85 = vld [vmem:[%s1 + $0x210] sm:$0xff]
    %v86 = vld [vmem:[%s1 + $0x218] sm:$0xff]
    %v87 = vld [vmem:[%s1 + $0x220] sm:$0xff]
    %v88 = vld [vmem:[%s1 + $0x228] sm:$0xff]
    %v89 = vld [vmem:[%s1 + $0x230] sm:$0xff]
    %v90 = vld [vmem:[%s1 + $0x238] sm:$0xff]
    %v91 = vld [vmem:[%s1 + $0x240] sm:$0xff]
    %v92 = vld [vmem:[%s1 + $0x248] sm:$0xff]
    %v93 = vld [vmem:[%s1 + $0x250] sm:$0xff]
    %v94 = vld [vmem:[%s1 + $0x258] sm:$0xff]
    %v95 = vld [vmem:[%s1 + $0x260] sm:$0xff]
    %v96 = vld [vmem:[%s1 + $0x268] sm:$0xff]
    %v97 = vld [vmem:[%s1 + $0x270] sm:$0xff]
    %v98 = vld [vmem:[%s1 + $0x278] sm:$0xff]
    %v99 = vld [vmem:[%s1 + $0x280] sm:$0xff]
    %v100 = vld [vmem:[%s1 + $0x288] sm:$0xff]
    %v101 = vld [vmem:[%s1 + $0x290] sm:$0xff]
    %v102 = vld [vmem:[%s1 + $0x298] sm:$0xff]
    %v103 = vld [vmem:[%s1 + $0x2a0] sm:$0xff]
    %v104 = vld [vmem:[%s1 + $0x2a8] sm:$0xff]
    %v105 = vld [vmem:[%s1 + $0x2b0] sm:$0xff]
    %v106 = vld [vmem:[%s1 + $0x2b8] sm:$0xff]
    %v107 = vld [vmem:[%s1 + $0x2c0] sm:$0xff]
    %v108 = vld [vmem:[%s1 + $0x2c8] sm:$0xff]
    %v109 = vld [vmem:[%s1 + $0x2d0] sm:$0xff]
    %v110 = vld [vmem:[%s1 + $0x2d8] sm:$0xff]
    %v111 = vld [vmem:[%s1 + $0x2e0] sm:$0xff]
    %v112 = vld [vmem:[%s1 + $0x2e8] sm:$0xff]
    %v113 = vld [vmem:[%s1 + $0x2f0] sm:$0xff]
    %v114 = vld [vmem:[%s1 + $0x2f8] sm:$0xff]
    %v115 = vld [vmem:[%s1 + $0x300] sm:$0xff]
    %v116 = vld [vmem:[%s1 + $0x308] sm:$0xff]
    %v117 = vld [vmem:[%s1 + $0x310] sm:$0xff]
    %v118 = vld [vmem:[%s1 + $0x318] sm:$0xff]
    %v119 = vld [vmem:[%s1 + $0x320] sm:$0xff]
    %v120 = vld [vmem:[%s1 + $0x328] sm:$0xff]
    %v121 = vld [vmem:[%s1 + $0x330] sm:$0xff]
    %v122 = vld [vmem:[%s1 + $0x338] sm:$0xff]
    %v123 = vld [vmem:[%s1 + $0x340] sm:$0xff]
    %v124 = vld [vmem:[%s1 + $0x348] sm:$0xff]
    %v125 = vld [vmem:[%s1 + $0x350] sm:$0xff]
    %v126 = vld [vmem:[%s1 + $0x358] sm:$0xff]
    %v127 = vld [vmem:[%s1 + $0x360] sm:$0xff]
    %v128 = vld [vmem:[%s1 + $0x368] sm:$0xff]
    %v129 = vld [vmem:[%s1 + $0x370] sm:$0xff]
    %v130 = vld [vmem:[%s1 + $0x378] sm:$0xff]
    %v131 = vld [vmem:[%s1 + $0x380] sm:$0xff]
    %v132 = vld [vmem:[%s1 + $0x388] sm:$0xff]
    %v133 = vld [vmem:[%s1 + $0x390] sm:$0xff]
    %v134 = vld [vmem:[%s1 + $0x398] sm:$0xff]
    %v135 = vld [vmem:[%s1 + $0x3a0] sm:$0xff]
    %v136 = vld [vmem:[%s1 + $0x3a8] sm:$0xff]
    %v137 = vld [vmem:[%s1 + $0x3b0] sm:$0xff]
    %v138 = vld [vmem:[%s1 + $0x3b8] sm:$0xff]
    %v139 = vld [vmem:[%s1 + $0x3c0] sm:$0xff]
    %v140 = vld [vmem:[%s1 + $0x3c8] sm:$0xff]
    %v141 = vld [vmem:[%s1 + $0x3d0] sm:$0xff]
    %v142 = vld [vmem:[%s1 + $0x3d8] sm:$0xff]
    %v143 = vld [vmem:[%s1 + $0x3e0] sm:$0xff]
    %v144 = vld [vmem:[%s1 + $0x3e8] sm:$0xff]
    %v145 = vld [vmem:[%s1 + $0x3f0] sm:$0xff]
    %v146 = vld [vmem:[%s1 + $0x3f8] sm:$0xff]
    %v147 = vld [vmem:[%s1 + $0x400] sm:$0xff]
    %v148 = vld [vmem:[%s1 + $0x408] sm:$0xff]
    %v149 = vld [vmem:[%s1 + $0x410] sm:$0xff]
    %v150 = vld [vmem:[%s1 + $0x418] sm:$0xff]
    %v151 = vld [vmem:[%s1 + $0x420] sm:$0xff]
    %v152 = vld [vmem:[%s1 + $0x428] sm:$0xff]
    %v153 = vld [vmem:[%s1 + $0x430] sm:$0xff]
    %v154 = vld [vmem:[%s1 + $0x438] sm:$0xff]
    %v155 = vld [vmem:[%s1 + $0x440] sm:$0xff]
    %v156 = vld [vmem:[%s1 + $0x448] sm:$0xff]
    %v157 = vld [vmem:[%s1 + $0x450] sm:$0xff]
    %v158 = vld [vmem:[%s1 + $0x458] sm:$0xff]
    %v159 = vld [vmem:[%s1 + $0x460] sm:$0xff]
    %v160 = vld [vmem:[%s1 + $0x468] sm:$0xff]
    %v161 = vld [vmem:[%s1 + $0x470] sm:$0xff]
    %v162 = vld [vmem:[%s1 + $0x478] sm:$0xff]
    %v163 = vld [vmem:[%s1 + $0x480] sm:$0xff]
    %v164 = vld [vmem:[%s1 + $0x488] sm:$0xff]
    %v165 = vld [vmem:[%s1 + $0x490] sm:$0xff]
    %v166 = vld [vmem:[%s1 + $0x498] sm:$0xff]
    %v167 = vld [vmem:[%s1 + $0x4a0] sm:$0xff]
    %v168 = vld [vmem:[%s1 + $0x4a8] sm:$0xff]
    %v169 = vld [vmem:[%s1 + $0x4b0] sm:$0xff]
    %v170 = vld [vmem:[%s1 + $0x4b8] sm:$0xff]
    %v171 = vld [vmem:[%s1 + $0x4c0] sm:$0xff]
    %v172 = vld [vmem:[%s1 + $0x4c8] sm:$0xff]
    %v173 = vld [vmem:[%s1 + $0x4d0] sm:$0xff]
    %v174 = vld [vmem:[%s1 + $0x4d8] sm:$0xff]
    %v175 = vld [vmem:[%s1 + $0x4e0] sm:$0xff]
    %v176 = vld [vmem:[%s1 + $0x4e8] sm:$0xff]
    %v177 = vld [vmem:[%s1 + $0x4f0] sm:$0xff]
    %v178 = vld [vmem:[%s1 + $0x4f8] sm:$0xff]
    %v179 = vld [vmem:[%s1 + $0x500] sm:$0xff]
    %v180 = vld [vmem:[%s1 + $0x508] sm:$0xff]
    %v181 = vld [vmem:[%s1 + $0x510] sm:$0xff]
    %v182 = vld [vmem:[%s1 + $0x518] sm:$0xff]
    %v183 = vld [vmem:[%s1 + $0x520] sm:$0xff]
    %v184 = vld [vmem:[%s1 + $0x528] sm:$0xff]
    %v185 = vld [vmem:[%s1 + $0x530] sm:$0xff]
    %v186 = vld [vmem:[%s1 + $0x538] sm:$0xff]
    %v187 = vld [vmem:[%s1 + $0x540] sm:$0xff]
    %v188 = vld [vmem:[%s1 + $0x548] sm:$0xff]
    %v189 = vld [vmem:[%s1 + $0x550] sm:$0xff]
    %v190 = vld [vmem:[%s1 + $0x558] sm:$0xff]
    %v191 = vld [vmem:[%s1 + $0x560] sm:$0xff]
    %v192 = vld [vmem:[%s1 + $0x568] sm:$0xff]
    %v193 = vld [vmem:[%s1 + $0x570] sm:$0xff]
    %v194 = vld [vmem:[%s1 + $0x578] sm:$0xff]
    %v195 = vld [vmem:[%s1 + $0x580] sm:$0xff]
    %v196 = vld [vmem:[%s1 + $0x588] sm:$0xff]
    %v197 = vld [vmem:[%s1 + $0x590] sm:$0xff]
    %v198 = vld [vmem:[%s1 + $0x598] sm:$0xff]
    %v199 = vld [vmem:[%s1 + $0x5a0] sm:$0xff]
    %v200 = vld [vmem:[%s1 + $0x5a8] sm:$0xff]
    %v201 = vld [vmem:[%s1 + $0x5b0] sm:$0xff]
    %v202 = vld [vmem:[%s1 + $0x5b8] sm:$0xff]
    %v203 = vld [vmem:[%s1 + $0x5c0] sm:$0xff]
    %v204 = vld [vmem:[%s1 + $0x5c8] sm:$0xff]
    %v205 = vld [vmem:[%s1 + $0x5d0] sm:$0xff]
    %v206 = vld [vmem:[%s1 + $0x5d8] sm:$0xff]
    %v207 = vld [vmem:[%s1 + $0x5e0] sm:$0xff]
    %v208 = vld [vmem:[%s1 + $0x5e8] sm:$0xff]
    %v209 = vld [vmem:[%s1 + $0x5f0] sm:$0xff]
    %v210 = vld [vmem:[%s1 + $0x5f8] sm:$0xff]
    %v211 = vld [vmem:[%s1 + $0x600] sm:$0xff]
    %v212 = vld [vmem:[%s1 + $0x608] sm:$0xff]
    %v213 = vld [vmem:[%s1 + $0x610] sm:$0xff]
    %v214 = vld [vmem:[%s1 + $0x618] sm:$0xff]
    %v215 = vld [vmem:[%s1 + $0x620] sm:$0xff]
    %v216 = vld [vmem:[%s1 + $0x628] sm:$0xff]
    %v217 = vld [vmem:[%s1 + $0x630] sm:$0xff]
    %v218 = vld [vmem:[%s1 + $0x638] sm:$0xff]
    %v219 = vld [vmem:[%s1 + $0x640] sm:$0xff]
    %v220 = vld [vmem:[%s1 + $0x648] sm:$0xff]
    %v221 = vld [vmem:[%s1 + $0x650] sm:$0xff]
    %v222 = vld [vmem:[%s1 + $0x658] sm:$0xff]
    %v223 = vld [vmem:[%s1 + $0x660] sm:$0xff]
    %v224 = vld [vmem:[%s1 + $0x668] sm:$0xff]
    %v225 = vld [vmem:[%s1 + $0x670] sm:$0xff]
    %v226 = vld [vmem:[%s1 + $0x678] sm:$0xff]
    %v227 = vld [vmem:[%s1 + $0x680] sm:$0xff]
    %v228 = vld [vmem:[%s1 + $0x688] sm:$0xff]
    %v229 = vld [vmem:[%s1 + $0x690] sm:$0xff]
    %v230 = vld [vmem:[%s1 + $0x698] sm:$0xff]
    %v231 = vld [vmem:[%s1 + $0x6a0] sm:$0xff]
    %v232 = vld [vmem:[%s1 + $0x6a8] sm:$0xff]
    %v233 = vld [vmem:[%s1 + $0x6b0] sm:$0xff]
    %v234 = vld [vmem:[%s1 + $0x6b8] sm:$0xff]
    %v235 = vld [vmem:[%s1 + $0x6c0] sm:$0xff]
    %v236 = vld [vmem:[%s1 + $0x6c8] sm:$0xff]
    %v237 = vld [vmem:[%s1 + $0x6d0] sm:$0xff]
    %v238 = vld [vmem:[%s1 + $0x6d8] sm:$0xff]
    %v239 = vld [vmem:[%s1 + $0x6e0] sm:$0xff]
    %v240 = vld [vmem:[%s1 + $0x6e8] sm:$0xff]
    %v241 = vld [vmem:[%s1 + $0x6f0] sm:$0xff]
    %v242 = vld [vmem:[%s1 + $0x6f8] sm:$0xff]
    %v243 = vld [vmem:[%s1 + $0x700] sm:$0xff]
    %v244 = vld [vmem:[%s1 + $0x708] sm:$0xff]
    %v245 = vld [vmem:[%s1 + $0x710] sm:$0xff]
    %v246 = vld [vmem:[%s1 + $0x718] sm:$0xff]
    %v247 = vld [vmem:[%s1 + $0x720] sm:$0xff]
    %v248 = vld [vmem:[%s1 + $0x728] sm:$0xff]
    %v249 = vld [vmem:[%s1 + $0x730] sm:$0xff]
    %v250 = vld [vmem:[%s1 + $0x738] sm:$0xff]
    %v251 = vld [vmem:[%s1 + $0x740] sm:$0xff]
    %v252 = vld [vmem:[%s1 + $0x748] sm:$0xff]
    %v253 = vld [vmem:[%s1 + $0x750] sm:$0xff]
    %v254 = vld [vmem:[%s1 + $0x758] sm:$0xff]
    %v255 = vld [vmem:[%s1 + $0x760] sm:$0xff]
    %v256 = vld [vmem:[%s1 + $0x768] sm:$0xff]
    %v257 = vld [vmem:[%s1 + $0x770] sm:$0xff]
    %v258 = vld [vmem:[%s1 + $0x778] sm:$0xff]
    %v259 = vld [vmem:[%s1 + $0x780] sm:$0xff]
    %v260 = vld [vmem:[%s1 + $0x788] sm:$0xff]
    %v261 = vld [vmem:[%s1 + $0x790] sm:$0xff]
    %v262 = vld [vmem:[%s1 + $0x798] sm:$0xff]
    %v263 = vld [vmem:[%s1 + $0x7a0] sm:$0xff]
    %v264 = vld [vmem:[%s1 + $0x7a8] sm:$0x3]
    %v265 = vld [vmem:[%s2] sm:$0x1]
    %v266 = vlaneseq
    %v267 = vshrl.u32 %v266, 7
    %v268 = vsub.s32 0, %v267
    %v269 = vrot.slane %v265, %v268
    %v274 = vcombine.high %v15, %v15
    %v276 = vunpack.c.l.s4 1983009808
    %v277 = vunpack.c.0.s8 %v276
    %v278 = vlaneseq
    %v279 = vshrl.u32 %v278, 7
    %v280 = vsub.s32 %v277, %v279
    %v281 = vrot.slane %v15, %v280
    %v283 = vunpack.c.l.s4 1983009808
    %v284 = vunpack.c.0.s8 %v283
    %v285 = vlaneseq
    %v286 = vshrl.u32 %v285, 7
    %v287 = vsub.s32 %v284, %v286
    %v288 = vrot.slane %v274, %v287
    %v289 = vcombine.high %v281, %v281
    %v290 = vcombine.high %v288, %v288
    %v291 = vcombine.high %v16, %v16
    %v293 = vunpack.c.l.s4 1983009808
    %v294 = vunpack.c.0.s8 %v293
    %v295 = vlaneseq
    %v296 = vshrl.u32 %v295, 7
    %v297 = vsub.s32 %v294, %v296
    %v298 = vrot.slane %v16, %v297
    %v300 = vunpack.c.l.s4 1983009808
    %v301 = vunpack.c.0.s8 %v300
    %v302 = vlaneseq
    %v303 = vshrl.u32 %v302, 7
    %v304 = vsub.s32 %v301, %v303
    %v305 = vrot.slane %v291, %v304
    %v306 = vcombine.high %v298, %v298
    %v307 = vcombine.high %v305, %v305
    %v308 = vcombine.high %v17, %v17
    %v310 = vunpack.c.l.s4 1983009808
    %v311 = vunpack.c.0.s8 %v310
    %v312 = vlaneseq
    %v313 = vshrl.u32 %v312, 7
    %v314 = vsub.s32 %v311, %v313
    %v315 = vrot.slane %v17, %v314
    %v317 = vunpack.c.l.s4 1983009808
    %v318 = vunpack.c.0.s8 %v317
    %v319 = vlaneseq
    %v320 = vshrl.u32 %v319, 7
    %v321 = vsub.s32 %v318, %v320
    %v322 = vrot.slane %v308, %v321
    %v323 = vcombine.high %v315, %v315
    %v324 = vcombine.high %v322, %v322
    %v325 = vcombine.high %v18, %v18
    %v327 = vunpack.c.l.s4 1983009808
    %v328 = vunpack.c.0.s8 %v327
    %v329 = vlaneseq
    %v330 = vshrl.u32 %v329, 7
    %v331 = vsub.s32 %v328, %v330
    %v332 = vrot.slane %v18, %v331
    %v334 = vunpack.c.l.s4 1983009808
    %v335 = vunpack.c.0.s8 %v334
    %v336 = vlaneseq
    %v337 = vshrl.u32 %v336, 7
    %v338 = vsub.s32 %v335, %v337
    %v339 = vrot.slane %v325, %v338
    %v340 = vcombine.high %v332, %v332
    %v341 = vcombine.high %v339, %v339
    %vm357 = vcmask 343040
    %v358 = vsel %vm357, %v341, 0
    %vm360 = vcmask 1041408
    %v362 = vsel %vm360, %v264, 0
    %364 = vmatprep.subr.mxu0 0.0
    %365 = vmatpush1.msra.mxu0 %v34
    %366 = vmatprep.subr.mxu0 0.0
    %367 = vmatpush1.msra.mxu0 %v33
    %368 = vmatprep.subr.mxu0 0.0
    %369 = vmatpush1.msra.mxu0 %v32
    %370 = vmatprep.subr.mxu0 0.0
    %371 = vmatpush1.msra.mxu0 %v31
    %372 = vmatprep.subr.mxu0 0.0
    %373 = vmatpush1.msra.mxu0 %v30
    %374 = vmatprep.subr.mxu0 0.0
    %375 = vmatpush1.msra.mxu0 %v29
    %376 = vmatprep.subr.mxu0 0.0
    %377 = vmatpush1.msra.mxu0 %v28
    %378 = vmatprep.subr.mxu0 0.0
    %379 = vmatpush1.msra.mxu0 %v27
    %380 = vmatprep.subr.mxu0 0.0
    %381 = vmatpush1.msra.mxu0 %v26
    %382 = vmatprep.subr.mxu0 0.0
    %383 = vmatpush1.msra.mxu0 %v25
    %384 = vmatprep.subr.mxu0 0.0
    %385 = vmatpush1.msra.mxu0 %v24
    %386 = vmatprep.subr.mxu0 0.0
    %387 = vmatpush1.msra.mxu0 %v23
    %388 = vmatprep.subr.mxu0 0.0
    %389 = vmatpush1.msra.mxu0 %v22
    %390 = vmatprep.subr.mxu0 0.0
    %391 = vmatpush1.msra.mxu0 %v21
    %392 = vmatprep.subr.mxu0 0.0
    %393 = vmatpush1.msra.mxu0 %v20
    %394 = vmatprep.subr.mxu0 0.0
    %395 = vmatpush1.msra.mxu0 %v19
    %396 = vmatprep.subr.mxu0 0.0
    %397 = vmatpush2.msra.mxu0 %v50
    %398 = vmatprep.subr.mxu0 0.0
    %399 = vmatpush2.msra.mxu0 %v49
    %400 = vmatprep.subr.mxu0 0.0
    %401 = vmatpush2.msra.mxu0 %v48
    %402 = vmatprep.subr.mxu0 0.0
    %403 = vmatpush2.msra.mxu0 %v47
    %404 = vmatprep.subr.mxu0 0.0
    %405 = vmatpush2.msra.mxu0 %v46
    %406 = vmatprep.subr.mxu0 0.0
    %407 = vmatpush2.msra.mxu0 %v45
    %408 = vmatprep.subr.mxu0 0.0
    %409 = vmatpush2.msra.mxu0 %v44
    %410 = vmatprep.subr.mxu0 0.0
    %411 = vmatpush2.msra.mxu0 %v43
    %412 = vmatprep.subr.mxu0 0.0
    %413 = vmatpush2.msra.mxu0 %v42
    %414 = vmatprep.subr.mxu0 0.0
    %415 = vmatpush2.msra.mxu0 %v41
    %416 = vmatprep.subr.mxu0 0.0
    %417 = vmatpush2.msra.mxu0 %v40
    %418 = vmatprep.subr.mxu0 0.0
    %419 = vmatpush2.msra.mxu0 %v39
    %420 = vmatprep.subr.mxu0 0.0
    %421 = vmatpush2.msra.mxu0 %v38
    %422 = vmatprep.subr.mxu0 0.0
    %423 = vmatpush2.msra.mxu0 %v37
    %424 = vmatprep.subr.mxu0 0.0
    %425 = vmatpush2.msra.mxu0 %v36
    %426 = vmatprep.subr.mxu0 0.0
    %427 = vmatpush2.msra.mxu0 %v35
    %428 = vmatprep.mubr.f32.mxu0 %v289
    %429 = vmatmul.mubr.f32.gmra.mxu0 %v281
    %v430 = vpop.f32.mrf.mxu0
    %v431 = vadd.f32 %v269, %v430
    %v432 = vpop.f32.mrf.mxu0
    %433 = vdwg.mxu0
    %434 = vmatprep.subr.mxu0 0.0
    %435 = vmatpush1.msra.mxu0 %v66
    %436 = vmatprep.subr.mxu0 0.0
    %437 = vmatpush1.msra.mxu0 %v65
    %438 = vmatprep.subr.mxu0 0.0
    %439 = vmatpush1.msra.mxu0 %v64
    %440 = vmatprep.subr.mxu0 0.0
    %441 = vmatpush1.msra.mxu0 %v63
    %442 = vmatprep.subr.mxu0 0.0
    %443 = vmatpush1.msra.mxu0 %v62
    %444 = vmatprep.subr.mxu0 0.0
    %445 = vmatpush1.msra.mxu0 %v61
    %446 = vmatprep.subr.mxu0 0.0
    %447 = vmatpush1.msra.mxu0 %v60
    %448 = vmatprep.subr.mxu0 0.0
    %449 = vmatpush1.msra.mxu0 %v59
    %450 = vmatprep.subr.mxu0 0.0
    %451 = vmatpush1.msra.mxu0 %v58
    %452 = vmatprep.subr.mxu0 0.0
    %453 = vmatpush1.msra.mxu0 %v57
    %454 = vmatprep.subr.mxu0 0.0
    %455 = vmatpush1.msra.mxu0 %v56
    %456 = vmatprep.subr.mxu0 0.0
    %457 = vmatpush1.msra.mxu0 %v55
    %458 = vmatprep.subr.mxu0 0.0
    %459 = vmatpush1.msra.mxu0 %v54
    %460 = vmatprep.subr.mxu0 0.0
    %461 = vmatpush1.msra.mxu0 %v53
    %462 = vmatprep.subr.mxu0 0.0
    %463 = vmatpush1.msra.mxu0 %v52
    %464 = vmatprep.subr.mxu0 0.0
    %465 = vmatpush1.msra.mxu0 %v51
    %466 = vmatprep.subr.mxu0 0.0
    %467 = vmatpush2.msra.mxu0 %v82
    %468 = vmatprep.subr.mxu0 0.0
    %469 = vmatpush2.msra.mxu0 %v81
    %470 = vmatprep.subr.mxu0 0.0
    %471 = vmatpush2.msra.mxu0 %v80
    %472 = vmatprep.subr.mxu0 0.0
    %473 = vmatpush2.msra.mxu0 %v79
    %474 = vmatprep.subr.mxu0 0.0
    %475 = vmatpush2.msra.mxu0 %v78
    %476 = vmatprep.subr.mxu0 0.0
    %477 = vmatpush2.msra.mxu0 %v77
    %478 = vmatprep.subr.mxu0 0.0
    %479 = vmatpush2.msra.mxu0 %v76
    %480 = vmatprep.subr.mxu0 0.0
    %481 = vmatpush2.msra.mxu0 %v75
    %482 = vmatprep.subr.mxu0 0.0
    %483 = vmatpush2.msra.mxu0 %v74
    %484 = vmatprep.subr.mxu0 0.0
    %485 = vmatpush2.msra.mxu0 %v73
    %486 = vmatprep.subr.mxu0 0.0
    %487 = vmatpush2.msra.mxu0 %v72
    %488 = vmatprep.subr.mxu0 0.0
    %489 = vmatpush2.msra.mxu0 %v71
    %490 = vmatprep.subr.mxu0 0.0
    %491 = vmatpush2.msra.mxu0 %v70
    %492 = vmatprep.subr.mxu0 0.0
    %493 = vmatpush2.msra.mxu0 %v69
    %494 = vmatprep.subr.mxu0 0.0
    %495 = vmatpush2.msra.mxu0 %v68
    %496 = vmatprep.subr.mxu0 0.0
    %497 = vmatpush2.msra.mxu0 %v67
    %498 = vmatprep.mubr.f32.mxu0 %v290
    %499 = vmatmul.mubr.f32.gmra.mxu0 %v288
    %v500 = vpop.f32.mrf.mxu0
    %v501 = vadd.f32 %v431, %v500
    %v502 = vpop.f32.mrf.mxu0
    %503 = vdwg.mxu0
    %504 = vmatprep.subr.mxu0 0.0
    %505 = vmatpush1.msra.mxu0 %v98
    %506 = vmatprep.subr.mxu0 0.0
    %507 = vmatpush1.msra.mxu0 %v97
    %508 = vmatprep.subr.mxu0 0.0
    %509 = vmatpush1.msra.mxu0 %v96
    %510 = vmatprep.subr.mxu0 0.0
    %511 = vmatpush1.msra.mxu0 %v95
    %512 = vmatprep.subr.mxu0 0.0
    %513 = vmatpush1.msra.mxu0 %v94
    %514 = vmatprep.subr.mxu0 0.0
    %515 = vmatpush1.msra.mxu0 %v93
    %516 = vmatprep.subr.mxu0 0.0
    %517 = vmatpush1.msra.mxu0 %v92
    %518 = vmatprep.subr.mxu0 0.0
    %519 = vmatpush1.msra.mxu0 %v91
    %520 = vmatprep.subr.mxu0 0.0
    %521 = vmatpush1.msra.mxu0 %v90
    %522 = vmatprep.subr.mxu0 0.0
    %523 = vmatpush1.msra.mxu0 %v89
    %524 = vmatprep.subr.mxu0 0.0
    %525 = vmatpush1.msra.mxu0 %v88
    %526 = vmatprep.subr.mxu0 0.0
    %527 = vmatpush1.msra.mxu0 %v87
    %528 = vmatprep.subr.mxu0 0.0
    %529 = vmatpush1.msra.mxu0 %v86
    %530 = vmatprep.subr.mxu0 0.0
    %531 = vmatpush1.msra.mxu0 %v85
    %532 = vmatprep.subr.mxu0 0.0
    %533 = vmatpush1.msra.mxu0 %v84
    %534 = vmatprep.subr.mxu0 0.0
    %535 = vmatpush1.msra.mxu0 %v83
    %536 = vmatprep.subr.mxu0 0.0
    %537 = vmatpush2.msra.mxu0 %v114
    %538 = vmatprep.subr.mxu0 0.0
    %539 = vmatpush2.msra.mxu0 %v113
    %540 = vmatprep.subr.mxu0 0.0
    %541 = vmatpush2.msra.mxu0 %v112
    %542 = vmatprep.subr.mxu0 0.0
    %543 = vmatpush2.msra.mxu0 %v111
    %544 = vmatprep.subr.mxu0 0.0
    %545 = vmatpush2.msra.mxu0 %v110
    %546 = vmatprep.subr.mxu0 0.0
    %547 = vmatpush2.msra.mxu0 %v109
    %548 = vmatprep.subr.mxu0 0.0
    %549 = vmatpush2.msra.mxu0 %v108
    %550 = vmatprep.subr.mxu0 0.0
    %551 = vmatpush2.msra.mxu0 %v107
    %552 = vmatprep.subr.mxu0 0.0
    %553 = vmatpush2.msra.mxu0 %v106
    %554 = vmatprep.subr.mxu0 0.0
    %555 = vmatpush2.msra.mxu0 %v105
    %556 = vmatprep.subr.mxu0 0.0
    %557 = vmatpush2.msra.mxu0 %v104
    %558 = vmatprep.subr.mxu0 0.0
    %559 = vmatpush2.msra.mxu0 %v103
    %560 = vmatprep.subr.mxu0 0.0
    %561 = vmatpush2.msra.mxu0 %v102
    %562 = vmatprep.subr.mxu0 0.0
    %563 = vmatpush2.msra.mxu0 %v101
    %564 = vmatprep.subr.mxu0 0.0
    %565 = vmatpush2.msra.mxu0 %v100
    %566 = vmatprep.subr.mxu0 0.0
    %567 = vmatpush2.msra.mxu0 %v99
    %568 = vmatprep.mubr.f32.mxu0 %v306
    %569 = vmatmul.mubr.f32.gmra.mxu0 %v298
    %v570 = vpop.f32.mrf.mxu0
    %v571 = vadd.f32 %v501, %v570
    %v572 = vpop.f32.mrf.mxu0
    %573 = vdwg.mxu0
    %574 = vmatprep.subr.mxu0 0.0
    %575 = vmatpush1.msra.mxu0 %v130
    %576 = vmatprep.subr.mxu0 0.0
    %577 = vmatpush1.msra.mxu0 %v129
    %578 = vmatprep.subr.mxu0 0.0
    %579 = vmatpush1.msra.mxu0 %v128
    %580 = vmatprep.subr.mxu0 0.0
    %581 = vmatpush1.msra.mxu0 %v127
    %582 = vmatprep.subr.mxu0 0.0
    %583 = vmatpush1.msra.mxu0 %v126
    %584 = vmatprep.subr.mxu0 0.0
    %585 = vmatpush1.msra.mxu0 %v125
    %586 = vmatprep.subr.mxu0 0.0
    %587 = vmatpush1.msra.mxu0 %v124
    %588 = vmatprep.subr.mxu0 0.0
    %589 = vmatpush1.msra.mxu0 %v123
    %590 = vmatprep.subr.mxu0 0.0
    %591 = vmatpush1.msra.mxu0 %v122
    %592 = vmatprep.subr.mxu0 0.0
    %593 = vmatpush1.msra.mxu0 %v121
    %594 = vmatprep.subr.mxu0 0.0
    %595 = vmatpush1.msra.mxu0 %v120
    %596 = vmatprep.subr.mxu0 0.0
    %597 = vmatpush1.msra.mxu0 %v119
    %598 = vmatprep.subr.mxu0 0.0
    %599 = vmatpush1.msra.mxu0 %v118
    %600 = vmatprep.subr.mxu0 0.0
    %601 = vmatpush1.msra.mxu0 %v117
    %602 = vmatprep.subr.mxu0 0.0
    %603 = vmatpush1.msra.mxu0 %v116
    %604 = vmatprep.subr.mxu0 0.0
    %605 = vmatpush1.msra.mxu0 %v115
    %606 = vmatprep.subr.mxu0 0.0
    %607 = vmatpush2.msra.mxu0 %v146
    %608 = vmatprep.subr.mxu0 0.0
    %609 = vmatpush2.msra.mxu0 %v145
    %610 = vmatprep.subr.mxu0 0.0
    %611 = vmatpush2.msra.mxu0 %v144
    %612 = vmatprep.subr.mxu0 0.0
    %613 = vmatpush2.msra.mxu0 %v143
    %614 = vmatprep.subr.mxu0 0.0
    %615 = vmatpush2.msra.mxu0 %v142
    %616 = vmatprep.subr.mxu0 0.0
    %617 = vmatpush2.msra.mxu0 %v141
    %618 = vmatprep.subr.mxu0 0.0
    %619 = vmatpush2.msra.mxu0 %v140
    %620 = vmatprep.subr.mxu0 0.0
    %621 = vmatpush2.msra.mxu0 %v139
    %622 = vmatprep.subr.mxu0 0.0
    %623 = vmatpush2.msra.mxu0 %v138
    %624 = vmatprep.subr.mxu0 0.0
    %625 = vmatpush2.msra.mxu0 %v137
    %626 = vmatprep.subr.mxu0 0.0
    %627 = vmatpush2.msra.mxu0 %v136
    %628 = vmatprep.subr.mxu0 0.0
    %629 = vmatpush2.msra.mxu0 %v135
    %630 = vmatprep.subr.mxu0 0.0
    %631 = vmatpush2.msra.mxu0 %v134
    %632 = vmatprep.subr.mxu0 0.0
    %633 = vmatpush2.msra.mxu0 %v133
    %634 = vmatprep.subr.mxu0 0.0
    %635 = vmatpush2.msra.mxu0 %v132
    %636 = vmatprep.subr.mxu0 0.0
    %637 = vmatpush2.msra.mxu0 %v131
    %638 = vmatprep.mubr.f32.mxu0 %v307
    %639 = vmatmul.mubr.f32.gmra.mxu0 %v305
    %v640 = vpop.f32.mrf.mxu0
    %v641 = vadd.f32 %v571, %v640
    %v642 = vpop.f32.mrf.mxu0
    %643 = vdwg.mxu0
    %644 = vmatprep.subr.mxu0 0.0
    %645 = vmatpush1.msra.mxu0 %v162
    %646 = vmatprep.subr.mxu0 0.0
    %647 = vmatpush1.msra.mxu0 %v161
    %648 = vmatprep.subr.mxu0 0.0
    %649 = vmatpush1.msra.mxu0 %v160
    %650 = vmatprep.subr.mxu0 0.0
    %651 = vmatpush1.msra.mxu0 %v159
    %652 = vmatprep.subr.mxu0 0.0
    %653 = vmatpush1.msra.mxu0 %v158
    %654 = vmatprep.subr.mxu0 0.0
    %655 = vmatpush1.msra.mxu0 %v157
    %656 = vmatprep.subr.mxu0 0.0
    %657 = vmatpush1.msra.mxu0 %v156
    %658 = vmatprep.subr.mxu0 0.0
    %659 = vmatpush1.msra.mxu0 %v155
    %660 = vmatprep.subr.mxu0 0.0
    %661 = vmatpush1.msra.mxu0 %v154
    %662 = vmatprep.subr.mxu0 0.0
    %663 = vmatpush1.msra.mxu0 %v153
    %664 = vmatprep.subr.mxu0 0.0
    %665 = vmatpush1.msra.mxu0 %v152
    %666 = vmatprep.subr.mxu0 0.0
    %667 = vmatpush1.msra.mxu0 %v151
    %668 = vmatprep.subr.mxu0 0.0
    %669 = vmatpush1.msra.mxu0 %v150
    %670 = vmatprep.subr.mxu0 0.0
    %671 = vmatpush1.msra.mxu0 %v149
    %672 = vmatprep.subr.mxu0 0.0
    %673 = vmatpush1.msra.mxu0 %v148
    %674 = vmatprep.subr.mxu0 0.0
    %675 = vmatpush1.msra.mxu0 %v147
    %676 = vmatprep.subr.mxu0 0.0
    %677 = vmatpush2.msra.mxu0 %v178
    %678 = vmatprep.subr.mxu0 0.0
    %679 = vmatpush2.msra.mxu0 %v177
    %680 = vmatprep.subr.mxu0 0.0
    %681 = vmatpush2.msra.mxu0 %v176
    %682 = vmatprep.subr.mxu0 0.0
    %683 = vmatpush2.msra.mxu0 %v175
    %684 = vmatprep.subr.mxu0 0.0
    %685 = vmatpush2.msra.mxu0 %v174
    %686 = vmatprep.subr.mxu0 0.0
    %687 = vmatpush2.msra.mxu0 %v173
    %688 = vmatprep.subr.mxu0 0.0
    %689 = vmatpush2.msra.mxu0 %v172
    %690 = vmatprep.subr.mxu0 0.0
    %691 = vmatpush2.msra.mxu0 %v171
    %692 = vmatprep.subr.mxu0 0.0
    %693 = vmatpush2.msra.mxu0 %v170
    %694 = vmatprep.subr.mxu0 0.0
    %695 = vmatpush2.msra.mxu0 %v169
    %696 = vmatprep.subr.mxu0 0.0
    %697 = vmatpush2.msra.mxu0 %v168
    %698 = vmatprep.subr.mxu0 0.0
    %699 = vmatpush2.msra.mxu0 %v167
    %700 = vmatprep.subr.mxu0 0.0
    %701 = vmatpush2.msra.mxu0 %v166
    %702 = vmatprep.subr.mxu0 0.0
    %703 = vmatpush2.msra.mxu0 %v165
    %704 = vmatprep.subr.mxu0 0.0
    %705 = vmatpush2.msra.mxu0 %v164
    %706 = vmatprep.subr.mxu0 0.0
    %707 = vmatpush2.msra.mxu0 %v163
    %708 = vmatprep.mubr.f32.mxu0 %v323
    %709 = vmatmul.mubr.f32.gmra.mxu0 %v315
    %v710 = vpop.f32.mrf.mxu0
    %v711 = vadd.f32 %v641, %v710
    %v712 = vpop.f32.mrf.mxu0
    %713 = vdwg.mxu0
    %714 = vmatprep.subr.mxu0 0.0
    %715 = vmatpush1.msra.mxu0 %v194
    %716 = vmatprep.subr.mxu0 0.0
    %717 = vmatpush1.msra.mxu0 %v193
    %718 = vmatprep.subr.mxu0 0.0
    %719 = vmatpush1.msra.mxu0 %v192
    %720 = vmatprep.subr.mxu0 0.0
    %721 = vmatpush1.msra.mxu0 %v191
    %722 = vmatprep.subr.mxu0 0.0
    %723 = vmatpush1.msra.mxu0 %v190
    %724 = vmatprep.subr.mxu0 0.0
    %725 = vmatpush1.msra.mxu0 %v189
    %726 = vmatprep.subr.mxu0 0.0
    %727 = vmatpush1.msra.mxu0 %v188
    %728 = vmatprep.subr.mxu0 0.0
    %729 = vmatpush1.msra.mxu0 %v187
    %730 = vmatprep.subr.mxu0 0.0
    %731 = vmatpush1.msra.mxu0 %v186
    %732 = vmatprep.subr.mxu0 0.0
    %733 = vmatpush1.msra.mxu0 %v185
    %734 = vmatprep.subr.mxu0 0.0
    %735 = vmatpush1.msra.mxu0 %v184
    %736 = vmatprep.subr.mxu0 0.0
    %737 = vmatpush1.msra.mxu0 %v183
    %738 = vmatprep.subr.mxu0 0.0
    %739 = vmatpush1.msra.mxu0 %v182
    %740 = vmatprep.subr.mxu0 0.0
    %741 = vmatpush1.msra.mxu0 %v181
    %742 = vmatprep.subr.mxu0 0.0
    %743 = vmatpush1.msra.mxu0 %v180
    %744 = vmatprep.subr.mxu0 0.0
    %745 = vmatpush1.msra.mxu0 %v179
    %746 = vmatprep.subr.mxu0 0.0
    %747 = vmatpush2.msra.mxu0 %v210
    %748 = vmatprep.subr.mxu0 0.0
    %749 = vmatpush2.msra.mxu0 %v209
    %750 = vmatprep.subr.mxu0 0.0
    %751 = vmatpush2.msra.mxu0 %v208
    %752 = vmatprep.subr.mxu0 0.0
    %753 = vmatpush2.msra.mxu0 %v207
    %754 = vmatprep.subr.mxu0 0.0
    %755 = vmatpush2.msra.mxu0 %v206
    %756 = vmatprep.subr.mxu0 0.0
    %757 = vmatpush2.msra.mxu0 %v205
    %758 = vmatprep.subr.mxu0 0.0
    %759 = vmatpush2.msra.mxu0 %v204
    %760 = vmatprep.subr.mxu0 0.0
    %761 = vmatpush2.msra.mxu0 %v203
    %762 = vmatprep.subr.mxu0 0.0
    %763 = vmatpush2.msra.mxu0 %v202
    %764 = vmatprep.subr.mxu0 0.0
    %765 = vmatpush2.msra.mxu0 %v201
    %766 = vmatprep.subr.mxu0 0.0
    %767 = vmatpush2.msra.mxu0 %v200
    %768 = vmatprep.subr.mxu0 0.0
    %769 = vmatpush2.msra.mxu0 %v199
    %770 = vmatprep.subr.mxu0 0.0
    %771 = vmatpush2.msra.mxu0 %v198
    %772 = vmatprep.subr.mxu0 0.0
    %773 = vmatpush2.msra.mxu0 %v197
    %774 = vmatprep.subr.mxu0 0.0
    %775 = vmatpush2.msra.mxu0 %v196
    %776 = vmatprep.subr.mxu0 0.0
    %777 = vmatpush2.msra.mxu0 %v195
    %778 = vmatprep.mubr.f32.mxu0 %v324
    %779 = vmatmul.mubr.f32.gmra.mxu0 %v322
    %v780 = vpop.f32.mrf.mxu0
    %v781 = vadd.f32 %v711, %v780
    %v782 = vpop.f32.mrf.mxu0
    %783 = vdwg.mxu0
    %784 = vmatprep.subr.mxu0 0.0
    %785 = vmatpush1.msra.mxu0 %v226
    %786 = vmatprep.subr.mxu0 0.0
    %787 = vmatpush1.msra.mxu0 %v225
    %788 = vmatprep.subr.mxu0 0.0
    %789 = vmatpush1.msra.mxu0 %v224
    %790 = vmatprep.subr.mxu0 0.0
    %791 = vmatpush1.msra.mxu0 %v223
    %792 = vmatprep.subr.mxu0 0.0
    %793 = vmatpush1.msra.mxu0 %v222
    %794 = vmatprep.subr.mxu0 0.0
    %795 = vmatpush1.msra.mxu0 %v221
    %796 = vmatprep.subr.mxu0 0.0
    %797 = vmatpush1.msra.mxu0 %v220
    %798 = vmatprep.subr.mxu0 0.0
    %799 = vmatpush1.msra.mxu0 %v219
    %800 = vmatprep.subr.mxu0 0.0
    %801 = vmatpush1.msra.mxu0 %v218
    %802 = vmatprep.subr.mxu0 0.0
    %803 = vmatpush1.msra.mxu0 %v217
    %804 = vmatprep.subr.mxu0 0.0
    %805 = vmatpush1.msra.mxu0 %v216
    %806 = vmatprep.subr.mxu0 0.0
    %807 = vmatpush1.msra.mxu0 %v215
    %808 = vmatprep.subr.mxu0 0.0
    %809 = vmatpush1.msra.mxu0 %v214
    %810 = vmatprep.subr.mxu0 0.0
    %811 = vmatpush1.msra.mxu0 %v213
    %812 = vmatprep.subr.mxu0 0.0
    %813 = vmatpush1.msra.mxu0 %v212
    %814 = vmatprep.subr.mxu0 0.0
    %815 = vmatpush1.msra.mxu0 %v211
    %816 = vmatprep.subr.mxu0 0.0
    %817 = vmatpush2.msra.mxu0 %v242
    %818 = vmatprep.subr.mxu0 0.0
    %819 = vmatpush2.msra.mxu0 %v241
    %820 = vmatprep.subr.mxu0 0.0
    %821 = vmatpush2.msra.mxu0 %v240
    %822 = vmatprep.subr.mxu0 0.0
    %823 = vmatpush2.msra.mxu0 %v239
    %824 = vmatprep.subr.mxu0 0.0
    %825 = vmatpush2.msra.mxu0 %v238
    %826 = vmatprep.subr.mxu0 0.0
    %827 = vmatpush2.msra.mxu0 %v237
    %828 = vmatprep.subr.mxu0 0.0
    %829 = vmatpush2.msra.mxu0 %v236
    %830 = vmatprep.subr.mxu0 0.0
    %831 = vmatpush2.msra.mxu0 %v235
    %832 = vmatprep.subr.mxu0 0.0
    %833 = vmatpush2.msra.mxu0 %v234
    %834 = vmatprep.subr.mxu0 0.0
    %835 = vmatpush2.msra.mxu0 %v233
    %836 = vmatprep.subr.mxu0 0.0
    %837 = vmatpush2.msra.mxu0 %v232
    %838 = vmatprep.subr.mxu0 0.0
    %839 = vmatpush2.msra.mxu0 %v231
    %840 = vmatprep.subr.mxu0 0.0
    %841 = vmatpush2.msra.mxu0 %v230
    %842 = vmatprep.subr.mxu0 0.0
    %843 = vmatpush2.msra.mxu0 %v229
    %844 = vmatprep.subr.mxu0 0.0
    %845 = vmatpush2.msra.mxu0 %v228
    %846 = vmatprep.subr.mxu0 0.0
    %847 = vmatpush2.msra.mxu0 %v227
    %848 = vmatprep.mubr.f32.mxu0 %v340
    %849 = vmatmul.mubr.f32.gmra.mxu0 %v332
    %v850 = vpop.f32.mrf.mxu0
    %v851 = vadd.f32 %v781, %v850
    %v852 = vpop.f32.mrf.mxu0
    %853 = vdwg.mxu0
    %854 = vmatprep.subr.mxu0 0.0
    %855 = vmatpush1.msra.mxu0 %v258
    %856 = vmatprep.subr.mxu0 0.0
    %857 = vmatpush1.msra.mxu0 %v257
    %858 = vmatprep.subr.mxu0 0.0
    %859 = vmatpush1.msra.mxu0 %v256
    %860 = vmatprep.subr.mxu0 0.0
    %861 = vmatpush1.msra.mxu0 %v255
    %862 = vmatprep.subr.mxu0 0.0
    %863 = vmatpush1.msra.mxu0 %v254
    %864 = vmatprep.subr.mxu0 0.0
    %865 = vmatpush1.msra.mxu0 %v253
    %866 = vmatprep.subr.mxu0 0.0
    %867 = vmatpush1.msra.mxu0 %v252
    %868 = vmatprep.subr.mxu0 0.0
    %869 = vmatpush1.msra.mxu0 %v251
    %870 = vmatprep.subr.mxu0 0.0
    %871 = vmatpush1.msra.mxu0 %v250
    %872 = vmatprep.subr.mxu0 0.0
    %873 = vmatpush1.msra.mxu0 %v249
    %874 = vmatprep.subr.mxu0 0.0
    %875 = vmatpush1.msra.mxu0 %v248
    %876 = vmatprep.subr.mxu0 0.0
    %877 = vmatpush1.msra.mxu0 %v247
    %878 = vmatprep.subr.mxu0 0.0
    %879 = vmatpush1.msra.mxu0 %v246
    %880 = vmatprep.subr.mxu0 0.0
    %881 = vmatpush1.msra.mxu0 %v245
    %882 = vmatprep.subr.mxu0 0.0
    %883 = vmatpush1.msra.mxu0 %v244
    %884 = vmatprep.subr.mxu0 0.0
    %885 = vmatpush1.msra.mxu0 %v243
    %886 = vmatprep.subr.mxu0 0.0
    %887 = vmatpush2.msra.mxu0 0.0
    %888 = vmatprep.subr.mxu0 0.0
    %889 = vmatpush2.msra.mxu0 0.0
    %890 = vmatprep.subr.mxu0 0.0
    %891 = vmatpush2.msra.mxu0 0.0
    %892 = vmatprep.subr.mxu0 0.0
    %893 = vmatpush2.msra.mxu0 0.0
    %894 = vmatprep.subr.mxu0 0.0
    %895 = vmatpush2.msra.mxu0 0.0
    %896 = vmatprep.subr.mxu0 0.0
    %897 = vmatpush2.msra.mxu0 0.0
    %898 = vmatprep.subr.mxu0 0.0
    %899 = vmatpush2.msra.mxu0 0.0
    %900 = vmatprep.subr.mxu0 0.0
    %901 = vmatpush2.msra.mxu0 0.0
    %902 = vmatprep.subr.mxu0 0.0
    %903 = vmatpush2.msra.mxu0 0.0
    %904 = vmatprep.subr.mxu0 0.0
    %905 = vmatpush2.msra.mxu0 0.0
    %906 = vmatprep.subr.mxu0 0.0
    %907 = vmatpush2.msra.mxu0 %v362
    %908 = vmatprep.subr.mxu0 0.0
    %909 = vmatpush2.msra.mxu0 %v263
    %910 = vmatprep.subr.mxu0 0.0
    %911 = vmatpush2.msra.mxu0 %v262
    %912 = vmatprep.subr.mxu0 0.0
    %913 = vmatpush2.msra.mxu0 %v261
    %914 = vmatprep.subr.mxu0 0.0
    %915 = vmatpush2.msra.mxu0 %v260
    %916 = vmatprep.subr.mxu0 0.0
    %917 = vmatpush2.msra.mxu0 %v259
    %918 = vmatprep.mubr.f32.mxu0 %v358
    %919 = vmatmul.mubr.f32.gmra.mxu0 %v339
    %v920 = vpop.f32.mrf.mxu0
    %v921 = vadd.f32 %v851, %v920
    %v922 = vpop.f32.mrf.mxu0
    %923 = vdwg.mxu0
    %v924 = vmax.f32 %v921, 0.0
    %v925 = vld [vmem:[%s2 + $0x8] sm:$0xff]
    %v926 = vld [vmem:[%s2 + $0x10] sm:$0xff]
    %v927 = vld [vmem:[%s2 + $0x18] sm:$0xff]
    %v928 = vld [vmem:[%s2 + $0x20] sm:$0xff]
    %v929 = vld [vmem:[%s2 + $0x28] sm:$0xff]
    %v930 = vld [vmem:[%s2 + $0x30] sm:$0xff]
    %v931 = vld [vmem:[%s2 + $0x38] sm:$0xff]
    %v932 = vld [vmem:[%s2 + $0x40] sm:$0x3]
    %v933 = vld [vmem:[%s2 + $0x48] sm:$0x1]
    %v934 = vlaneseq
    %v935 = vshrl.u32 %v934, 7
    %v936 = vsub.s32 0, %v935
    %v937 = vrot.slane %v933, %v936
    %vm938 = vcmask 474112
    %v940 = vsel %vm938, %v924, 0
    %v943 = vsel %vm360, %v932, 0
    %945 = vmatprep.subr.mxu0 0.0
    %946 = vmatpush1.msra.mxu0 0.0
    %947 = vmatprep.subr.mxu0 0.0
    %948 = vmatpush1.msra.mxu0 0.0
    %949 = vmatprep.subr.mxu0 0.0
    %950 = vmatpush1.msra.mxu0 0.0
    %951 = vmatprep.subr.mxu0 0.0
    %952 = vmatpush1.msra.mxu0 0.0
    %953 = vmatprep.subr.mxu0 0.0
    %954 = vmatpush1.msra.mxu0 0.0
    %955 = vmatprep.subr.mxu0 0.0
    %956 = vmatpush1.msra.mxu0 0.0
    %957 = vmatprep.subr.mxu0 0.0
    %958 = vmatpush1.msra.mxu0 0.0
    %959 = vmatprep.subr.mxu0 0.0
    %960 = vmatpush1.msra.mxu0 0.0
    %961 = vmatprep.subr.mxu0 0.0
    %962 = vmatpush1.msra.mxu0 %v943
    %963 = vmatprep.subr.mxu0 0.0
    %964 = vmatpush1.msra.mxu0 %v931
    %965 = vmatprep.subr.mxu0 0.0
    %966 = vmatpush1.msra.mxu0 %v930
    %967 = vmatprep.subr.mxu0 0.0
    %968 = vmatpush1.msra.mxu0 %v929
    %969 = vmatprep.subr.mxu0 0.0
    %970 = vmatpush1.msra.mxu0 %v928
    %971 = vmatprep.subr.mxu0 0.0
    %972 = vmatpush1.msra.mxu0 %v927
    %973 = vmatprep.subr.mxu0 0.0
    %974 = vmatpush1.msra.mxu0 %v926
    %975 = vmatprep.subr.mxu0 0.0
    %976 = vmatpush1.msra.mxu0 %v925
    %977 = vmatprep.subr.mxu0 0.0
    %978 = vmatpush2.msra.mxu0 0.0
    %979 = vmatprep.subr.mxu0 0.0
    %980 = vmatpush2.msra.mxu0 0.0
    %981 = vmatprep.subr.mxu0 0.0
    %982 = vmatpush2.msra.mxu0 0.0
    %983 = vmatprep.subr.mxu0 0.0
    %984 = vmatpush2.msra.mxu0 0.0
    %985 = vmatprep.subr.mxu0 0.0
    %986 = vmatpush2.msra.mxu0 0.0
    %987 = vmatprep.subr.mxu0 0.0
    %988 = vmatpush2.msra.mxu0 0.0
    %989 = vmatprep.subr.mxu0 0.0
    %990 = vmatpush2.msra.mxu0 0.0
    %991 = vmatprep.subr.mxu0 0.0
    %992 = vmatpush2.msra.mxu0 0.0
    %993 = vmatprep.subr.mxu0 0.0
    %994 = vmatpush2.msra.mxu0 0.0
    %995 = vmatprep.subr.mxu0 0.0
    %996 = vmatpush2.msra.mxu0 0.0
    %997 = vmatprep.subr.mxu0 0.0
    %998 = vmatpush2.msra.mxu0 0.0
    %999 = vmatprep.subr.mxu0 0.0
    %1000 = vmatpush2.msra.mxu0 0.0
    %1001 = vmatprep.subr.mxu0 0.0
    %1002 = vmatpush2.msra.mxu0 0.0
    %1003 = vmatprep.subr.mxu0 0.0
    %1004 = vmatpush2.msra.mxu0 0.0
    %1005 = vmatprep.subr.mxu0 0.0
    %1006 = vmatpush2.msra.mxu0 0.0
    %1007 = vmatprep.subr.mxu0 0.0
    %1008 = vmatpush2.msra.mxu0 0.0
    %1009 = vmatprep.mubr.f32.mxu0 0.0
    %1010 = vmatmul.mubr.f32.gmra.mxu0 %v940
    %v1011 = vpop.f32.mrf.mxu0
    %v1012 = vadd.f32 %v937, %v1011
    %v1013 = vpop.f32.mrf.mxu0
    %1014 = vdwg.mxu0
    %v1015 = vmax.f32 %v1012, 0.0
    %v1016 = vld [vmem:[%s2 + $0x50] sm:$0xff]
    %v1017 = vld [vmem:[%s2 + $0x58] sm:$0x3]
    %v1018 = vld [vmem:[%s2 + $0x60] sm:$0x1]
    %v1019 = vlaneseq
    %v1020 = vshrl.u32 %v1019, 7
    %v1021 = vsub.s32 0, %v1020
    %v1022 = vrot.slane %v1018, %v1021
    %vm1023 = vcmask 80896
    %v1025 = vsel %vm1023, %v1015, 0
    %v1028 = vsel %vm360, %v1017, 0
    %1030 = vmatprep.subr.mxu0 0.0
    %1031 = vmatpush1.msra.mxu0 0.0
    %1032 = vmatprep.subr.mxu0 0.0
    %1033 = vmatpush1.msra.mxu0 0.0
    %1034 = vmatprep.subr.mxu0 0.0
    %1035 = vmatpush1.msra.mxu0 0.0
    %1036 = vmatprep.subr.mxu0 0.0
    %1037 = vmatpush1.msra.mxu0 0.0
    %1038 = vmatprep.subr.mxu0 0.0
    %1039 = vmatpush1.msra.mxu0 0.0
    %1040 = vmatprep.subr.mxu0 0.0
    %1041 = vmatpush1.msra.mxu0 0.0
    %1042 = vmatprep.subr.mxu0 0.0
    %1043 = vmatpush1.msra.mxu0 0.0
    %1044 = vmatprep.subr.mxu0 0.0
    %1045 = vmatpush1.msra.mxu0 0.0
    %1046 = vmatprep.subr.mxu0 0.0
    %1047 = vmatpush1.msra.mxu0 0.0
    %1048 = vmatprep.subr.mxu0 0.0
    %1049 = vmatpush1.msra.mxu0 0.0
    %1050 = vmatprep.subr.mxu0 0.0
    %1051 = vmatpush1.msra.mxu0 0.0
    %1052 = vmatprep.subr.mxu0 0.0
    %1053 = vmatpush1.msra.mxu0 0.0
    %1054 = vmatprep.subr.mxu0 0.0
    %1055 = vmatpush1.msra.mxu0 0.0
    %1056 = vmatprep.subr.mxu0 0.0
    %1057 = vmatpush1.msra.mxu0 0.0
    %1058 = vmatprep.subr.mxu0 0.0
    %1059 = vmatpush1.msra.mxu0 %v1028
    %1060 = vmatprep.subr.mxu0 0.0
    %1061 = vmatpush1.msra.mxu0 %v1016
    %1062 = vmatprep.subr.mxu0 0.0
    %1063 = vmatpush2.msra.mxu0 0.0
    %1064 = vmatprep.subr.mxu0 0.0
    %1065 = vmatpush2.msra.mxu0 0.0
    %1066 = vmatprep.subr.mxu0 0.0
    %1067 = vmatpush2.msra.mxu0 0.0
    %1068 = vmatprep.subr.mxu0 0.0
    %1069 = vmatpush2.msra.mxu0 0.0
    %1070 = vmatprep.subr.mxu0 0.0
    %1071 = vmatpush2.msra.mxu0 0.0
    %1072 = vmatprep.subr.mxu0 0.0
    %1073 = vmatpush2.msra.mxu0 0.0
    %1074 = vmatprep.subr.mxu0 0.0
    %1075 = vmatpush2.msra.mxu0 0.0
    %1076 = vmatprep.subr.mxu0 0.0
    %1077 = vmatpush2.msra.mxu0 0.0
    %1078 = vmatprep.subr.mxu0 0.0
    %1079 = vmatpush2.msra.mxu0 0.0
    %1080 = vmatprep.subr.mxu0 0.0
    %1081 = vmatpush2.msra.mxu0 0.0
    %1082 = vmatprep.subr.mxu0 0.0
    %1083 = vmatpush2.msra.mxu0 0.0
    %1084 = vmatprep.subr.mxu0 0.0
    %1085 = vmatpush2.msra.mxu0 0.0
    %1086 = vmatprep.subr.mxu0 0.0
    %1087 = vmatpush2.msra.mxu0 0.0
    %1088 = vmatprep.subr.mxu0 0.0
    %1089 = vmatpush2.msra.mxu0 0.0
    %1090 = vmatprep.subr.mxu0 0.0
    %1091 = vmatpush2.msra.mxu0 0.0
    %1092 = vmatprep.subr.mxu0 0.0
    %1093 = vmatpush2.msra.mxu0 0.0
    %1094 = vmatprep.mubr.f32.mxu0 0.0
    %1095 = vmatmul.mubr.f32.gmra.mxu0 %v1025
    %v1096 = vpop.f32.mrf.mxu0
    %v1097 = vadd.f32 %v1022, %v1096
    %v1098 = vpop.f32.mrf.mxu0
    %1099 = vdwg.mxu0
    %vm1100 = vcmask 9216
    %1101 = vst.msk [vmem:[#allocation2] sm:$0x3] %vm1100, %v1097
    // Predicated region
    $region14: #{small_conv1d_mlp_forward.1} parent=1 // pred_check
      _
    $region15: #{small_conv1d_mlp_forward.1} parent=1 // pred_check_branch
      %1103 = sbr.rel (0) target = $region17
    $region16: #{small_conv1d_mlp_forward.1} parent=1 // pred_region
      %s1105 = ssub.s32 32, 32
      %1106 = vsyncadd [#allocation3], %s1105
      %s1108 = sshll.u32 [#allocation2], 4
      %s1109 = int_to_ptr.vmem [resolvable:$true] %s1108
      %1111 = dma.vmem_to_hbm [thread:$0]  %s1109, 32, %s3, [#allocation3]
    $region17: #{small_conv1d_mlp_forward.1} parent=1 // pred_fallthru
      _
    // Predicated region
    $region18: #{small_conv1d_mlp_forward.1} parent=1 // pred_check
      _
    $region19: #{small_conv1d_mlp_forward.1} parent=1 // pred_check_branch
      %1113 = sbr.rel (0) target = $region21
    $region20: #{small_conv1d_mlp_forward.1} parent=1 // pred_region
      %1114 = dma.done [#allocation3], 32
    $region21: #{small_conv1d_mlp_forward.1} parent=1 // pred_fallthru
      _
    %1115 = vsyncpa [#allocation3], 1

</llo_original>
